<compile_context>
chip_gen: v7x
topology: tpu7x:2x2x1
jax: 0.10.0
libtpu: 0.0.40
codegen_flags: <defaults>
</compile_context>

<pallas_src>
import jax
import jax.numpy as jnp
from jax import lax
from jax.experimental import pallas as pl
from jax.experimental.pallas import tpu as pltpu


def _round_up(n, m):
    return ((n + m - 1) // m) * m


def _scorer_kernel(x_ref, w_ref, b_ref, o_ref):
    """One (tile, D) batch slab -> lane-dense (1, tile) scores, entirely in VMEM.

    x_ref: (tile, D) f32, w_ref: (1, D) f32, b_ref: (1, 1) f32, o_ref: (1, tile) f32.
    """
    # Whole network folded to a single affine map; dropout is identity at inference.
    # TODO(synk): training-mode dropout (random masking) is intentionally omitted.
    y = lax.dot_general(
        w_ref[...], x_ref[...],
        dimension_numbers=(((1,), (1,)), ((), ())),   # contract feature axes
        preferred_element_type=jnp.float32)           # (1, tile) lane-dense
    o_ref[...] = y + b_ref[...]


def prepare_params(params):
    """Fold all 5 affine layers into one (1, D) weight row and a (1, 1) bias.

    Do this ONCE at weight-load / serving-init time, not per forward call.
    params: dict name -> (W, b) with W in (in_features, out_features) layout and
    b in (1, out_features).
    """
    w_all, b_all = None, None
    for name in ("l1", "l2", "l3", "l4", "l5"):
        w, b = params[name]
        if w_all is None:
            w_all, b_all = w, b
        else:
            w_all = w_all @ w
            b_all = b_all @ w + b
    # w_all: (D, 1), b_all: (1, 1)
    return jnp.asarray(w_all.T, jnp.float32), jnp.asarray(b_all, jnp.float32)


def aesthetic_predictor_forward(x, prepared, *, batch_tile=1024):
    """x: (B, D) float32.  prepared: output of prepare_params.  Returns (B, 1) f32."""
    w_row, b_all = prepared
    B, D = x.shape
    assert w_row.shape == (1, D) and b_all.shape == (1, 1)

    # Batch tile: multiple of 128 (lane-dense output stores), capped at batch_tile,
    # and sized so that any batch > 128 rows yields >= 2 grid steps (v7x dual-TC).
    tile = max(128, min(batch_tile, _round_up(pl.cdiv(B, 2), 128)))
    grid = (pl.cdiv(B, tile),)

    out_row = pl.pallas_call(
        _scorer_kernel,
        out_shape=jax.ShapeDtypeStruct((1, B), jnp.float32),
        grid_spec=pltpu.PrefetchScalarGridSpec(
            num_scalar_prefetch=0,
            grid=grid,
            in_specs=[
                pl.BlockSpec((tile, D), lambda i: (i, 0)),   # streamed batch slab of x
                pl.BlockSpec((1, D), lambda i: (0, 0)),      # resident folded weights
                pl.BlockSpec((1, 1), lambda i: (0, 0)),      # resident folded bias
            ],
            # Lane-dense output: one (1, tile) row per grid step.
            out_specs=pl.BlockSpec((1, tile), lambda i: (0, i)),
        ),
        compiler_params=pltpu.CompilerParams(
            dimension_semantics=("parallel",),
            vmem_limit_bytes=32 * 1024 * 1024,
        ),
    )(x.astype(jnp.float32), w_row, b_all)

    # (1, B) lane-dense row -> (B, 1) column of scores.
    return out_row.reshape(B, 1)


def init_params(input_size, key):
    """Deterministic init mirroring torch.nn.Linear defaults
    (uniform +/- 1/sqrt(fan_in)); weights stored as (in, out)."""
    sizes = [(input_size, 1024), (1024, 128), (128, 64), (64, 16), (16, 1)]
    names = ["l1", "l2", "l3", "l4", "l5"]
    params = {}
    for name, (fin, fout) in zip(names, sizes):
        key, kw, kb = jax.random.split(key, 3)
        bound = 1.0 / (fin ** 0.5)
        w = jax.random.uniform(kw, (fin, fout), jnp.float32, -bound, bound)
        b = jax.random.uniform(kb, (1, fout), jnp.float32, -bound, bound)
        params[name] = (w, b)
    return params


def reference_forward(x, params):
    """Pure-jnp f32 reference with the exact 5-layer structure of the torch module."""
    h = x
    for name in ("l1", "l2", "l3", "l4", "l5"):
        w, b = params[name]
        h = h @ w + b
    return h


if __name__ == "__main__":
    key = jax.random.PRNGKey(0)
    key, kx = jax.random.split(key)

    input_size = 768   # CLIP ViT-L/14 embedding width used by the real scorer
    batch = 384        # not a multiple of the 256-row tile -> exercises edge blocks;
                       # tile=256 -> 2 grid steps on the parallel axis

    x = jax.random.normal(kx, (batch, input_size), jnp.float32)
    params = init_params(input_size, key)

    # One-time weight fold (serving-init time in a real deployment).
    prepared = prepare_params(params)

    out = jax.block_until_ready(aesthetic_predictor_forward(x, prepared))
    ref = reference_forward(x, params)

    assert out.shape == (batch, 1), out.shape
    assert out.dtype == jnp.float32, out.dtype
    # The fold only reorders an f32 reduction; differences vs the layer-by-layer
    # reference are tiny.  Tolerance also covers TPU f32 matmul pass decomposition.
    max_err = float(jnp.max(jnp.abs(out - ref)))
    assert jnp.allclose(out, ref, atol=1e-2, rtol=1e-2), max_err

    print("KERNEL_OK")
</pallas_src>

<mosaic_0001>
module attributes {stable_mosaic.version = 11 : i64} {
  func.func @_scorer_kernel(%arg0: i32, %arg1: memref<256x768xf32, #tpu.memory_space<vmem>>, %arg2: memref<1x768xf32, #tpu.memory_space<vmem>>, %arg3: memref<1x1xf32, #tpu.memory_space<vmem>>, %arg4: memref<1x256xf32, #tpu.memory_space<vmem>>) attributes {dimension_semantics = [#tpu.dimension_semantics<parallel>], iteration_bounds = array<i64: 2>, scalar_prefetch = 0 : i64, scratch_operands = 0 : i64, tpu.core_type = #tpu.core_type<tc>, window_params = [{transform_indices = @transform_0, window_bounds = array<i64: 256, 768>}, {pipeline_mode = #tpu.pipeline_mode<synchronous>, transform_indices = @transform_1, window_bounds = array<i64: 1, 768>}, {pipeline_mode = #tpu.pipeline_mode<synchronous>, transform_indices = @transform_2, window_bounds = array<i64: 1, 1>}, {transform_indices = @transform_3, window_bounds = array<i64: 1, 256>}]} {
    %c0 = arith.constant 0 : index
    %c0_0 = arith.constant 0 : index
    %0 = vector.load %arg2[%c0, %c0_0] : memref<1x768xf32, #tpu.memory_space<vmem>>, vector<1x768xf32>
    %c0_1 = arith.constant 0 : index
    %c0_2 = arith.constant 0 : index
    %1 = vector.load %arg1[%c0_1, %c0_2] : memref<256x768xf32, #tpu.memory_space<vmem>>, vector<256x768xf32>
    %cst = arith.constant dense<0.000000e+00> : vector<1x256xf32>
    %2 = tpu.matmul %0, %1, %cst {dimension_numbers = #tpu.dot_dimension_numbers<[1], [1], [0], [0], [0, 0, 1, 0], [], []>} : vector<1x768xf32>, vector<256x768xf32>, vector<1x256xf32> -> vector<1x256xf32>
    %c0_3 = arith.constant 0 : index
    %c0_4 = arith.constant 0 : index
    %3 = vector.load %arg3[%c0_3, %c0_4] : memref<1x1xf32, #tpu.memory_space<vmem>>, vector<1x1xf32>
    %4 = vector.broadcast %3 : vector<1x1xf32> to vector<1x256xf32>
    %5 = arith.addf %2, %4 : vector<1x256xf32>
    %c0_5 = arith.constant 0 : index
    %c0_6 = arith.constant 0 : index
    %6 = vector.load %arg4[%c0_5, %c0_6] : memref<1x256xf32, #tpu.memory_space<vmem>>, vector<1x256xf32>
    tpu.vector_store %arg4[%c0_5, %c0_6], %5 {strides = array<i32>} : memref<1x256xf32, #tpu.memory_space<vmem>>, vector<1x256xf32>,
    return
  }
  func.func @transform_0(%arg0: i32) -> (i32, i32) {
    %c0_i32 = arith.constant 0 : i32
    %c0_i32_0 = arith.constant 0 : i32
    return %arg0, %c0_i32 : i32, i32
  }
  func.func @transform_1(%arg0: i32) -> (i32, i32) {
    %c0_i32 = arith.constant 0 : i32
    %c0_i32_0 = arith.constant 0 : i32
    %c0_i32_1 = arith.constant 0 : i32
    return %c0_i32, %c0_i32_0 : i32, i32
  }
  func.func @transform_2(%arg0: i32) -> (i32, i32) {
    %c0_i32 = arith.constant 0 : i32
    %c0_i32_0 = arith.constant 0 : i32
    %c0_i32_1 = arith.constant 0 : i32
    return %c0_i32, %c0_i32_0 : i32, i32
  }
  func.func @transform_3(%arg0: i32) -> (i32, i32) {
    %c0_i32 = arith.constant 0 : i32
    %c0_i32_0 = arith.constant 0 : i32
    return %c0_i32, %arg0 : i32, i32
  }
}

</mosaic_0001>

<llo_original>
// kernel: tpu_custom_call.1
$region0: #{tpu_custom_call.1}
  #allocation0 [shape = 'u32[]', space=smem, size = 0x4, offset = 0x4, fixed_abs, tag = 'smem constant byte address 0x4 - core index']
  #allocation1 [shape = 'u32[144,128]{1,0:T(1,128)}', space=vmem, size = 0x12000, scoped, tag = 'internal scratch']
  #allocation2 [shape = 'f32[1,1]{1,0:T(1,128)S(1)}', space=vmem, size = 0x200, scoped, tag = 'scoped memory for tpu_custom_call.1']
  %s0 = inlined_call_operand.hbm [shape: f32[384,768], index: 0, kind: input, shape index: {}]
  %s1 = inlined_call_operand.hbm [shape: f32[1,768], index: 1, kind: input, shape index: {}]
  %s2 = inlined_call_operand.<no memory space> [shape: f32[1,1], index: 2, kind: input, shape index: {}]
  %s3 = inlined_call_operand.hbm [shape: f32[1,384], index: 3, kind: output, shape index: {}]
  %s4 = sld [smem:[#allocation0]]
  $region53: #{tpu_custom_call.1} parent=0
    _
  %s6 = ssub.s32 1, %s4
  %s7 = scalar_select 0, %s6, %s4
  %v8 = vstv %s2
  %9 = vst [vmem:[#allocation2] sm:$0x1] %v8
  $region1: #{tpu_custom_call.1} parent=0
    #allocation3 [shape = 'u8[1572864]{0}', space=vmem, size = 0x180000, scoped, tag = 'input window, operand 0']
    #allocation4 [shape = 's32[2]{0}', space=sflag, size = 0x8, scoped, tag = 'scoped memory for tpu_custom_call.1']
    #allocation5 [shape = 's32[2]{0}', space=sflag, size = 0x8, scoped, tag = 'scoped memory for tpu_custom_call.1']
    #allocation6 [shape = 'u8[3072]{0}', space=vmem, size = 0xc00, scoped, tag = 'input window, operand 1, single buffered']
    #allocation7 [shape = 's32[1]{0}', space=sflag, size = 0x4, scoped, tag = 'scoped memory for tpu_custom_call.1']
    #allocation8 [shape = 'u8[2048]{0}', space=vmem, size = 0x800, scoped, tag = 'output window, operand 0']
    %10 = vsyncpa [#allocation4], 0
    %s11 = scalar_lea.sflag [#allocation4], 1
    %12 = vsyncpa %s11, 0
    %13 = vsyncpa [#allocation7], 0
    %14 = vsyncpa [#allocation5], 0
    %s15 = scalar_lea.sflag [#allocation5], 1
    %16 = vsyncpa %s15, 0
    loop: start=0, step=1, limit=4
    $region2: #{tpu_custom_call.1} parent=1 // loop_pre_header
      _
    $region3: #{tpu_custom_call.1} parent=1 // loop_header
      %s18 = sphi 0, %s22
      %p19 = scmp.ge.s32.totalorder %s18, 4
      %s28 = sphi 0, %s30
      %s31 = sphi 0, %s28
      %s32 = sphi 0, %s31
      %s48 = sphi 0, %s32
      %s52 = sphi 0, %s52
      %s54 = sphi 0, %s52
      %s55 = sphi 0, %s54
      %s69 = sphi 0, %s55
      %s73 = sphi 0, %s73
      %s75 = sphi 0, %s73
      %s76 = sphi 0, %s75
      %s90 = sphi 0, %s76
      %s96 = sphi 0, %s98
      %s99 = sphi 0, %s96
      %s100 = sphi 0, %s99
      %s116 = sphi 0, %s100
    $region4: #{tpu_custom_call.1} parent=1 // loop_header_branch
      %21 = sbr.rel (%p19) target = $region8
    $region5: #{tpu_custom_call.1} parent=1 // loop_body
      %s23 = ssub.s32 %s18, 1
      %s24 = ssub.s32 %s18, 2
      %s25 = sadd.s32 %s18, 1
      %s26 = ssub.s32 %s18, %s25
      %p27 = scmp.eq.s32.totalorder %s26, 0
      %s29 = sadd.s32 %s28, 1
      %s30 = scalar_select %p27, %s28, %s29
      %p33 = pneg %p27
      %p34 = scmp.eq.s32.totalorder %s18, 1
      %p35 = por %p33, %p34
      %p36 = scmp.ne.s32.totalorder %s28, %s31
      %p37 = scmp.eq.s32.totalorder %s18, 0
      %p38 = por %p36, %p37
      %p39 = scmp.ne.s32.totalorder %s28, %s31
      %p40 = scmp.eq.s32.totalorder %s23, 1
      %p41 = por %p39, %p40
      %p42 = scmp.ne.s32.totalorder %s31, %s32
      %p43 = scmp.eq.s32.totalorder %s23, 0
      %p44 = por %p42, %p43
      %p45 = scmp.ne.s32.totalorder %s31, %s32
      %p46 = scmp.eq.s32.totalorder %s24, 1
      %p47 = por %p45, %p46
      %p49 = scmp.ne.s32.totalorder %s32, %s48
      %p50 = scmp.eq.s32.totalorder %s24, 0
      %p51 = por %p49, %p50
      %s53 = sadd.s32 %s52, 1
      %p56 = scmp.eq.s32.totalorder %s18, 1
      %p57 = scmp.ne.s32.totalorder %s52, %s54
      %p58 = scmp.eq.s32.totalorder %s18, 0
      %p59 = por %p57, %p58
      %p60 = scmp.ne.s32.totalorder %s52, %s54
      %p61 = scmp.eq.s32.totalorder %s23, 1
      %p62 = por %p60, %p61
      %p63 = scmp.ne.s32.totalorder %s54, %s55
      %p64 = scmp.eq.s32.totalorder %s23, 0
      %p65 = por %p63, %p64
      %p66 = scmp.ne.s32.totalorder %s54, %s55
      %p67 = scmp.eq.s32.totalorder %s24, 1
      %p68 = por %p66, %p67
      %p70 = scmp.ne.s32.totalorder %s55, %s69
      %p71 = scmp.eq.s32.totalorder %s24, 0
      %p72 = por %p70, %p71
      %s74 = sadd.s32 %s73, 1
      %p77 = scmp.eq.s32.totalorder %s18, 1
      %p78 = scmp.ne.s32.totalorder %s73, %s75
      %p79 = scmp.eq.s32.totalorder %s18, 0
      %p80 = por %p78, %p79
      %p81 = scmp.ne.s32.totalorder %s73, %s75
      %p82 = scmp.eq.s32.totalorder %s23, 1
      %p83 = por %p81, %p82
      %p84 = scmp.ne.s32.totalorder %s75, %s76
      %p85 = scmp.eq.s32.totalorder %s23, 0
      %p86 = por %p84, %p85
      %p87 = scmp.ne.s32.totalorder %s75, %s76
      %p88 = scmp.eq.s32.totalorder %s24, 1
      %p89 = por %p87, %p88
      %p91 = scmp.ne.s32.totalorder %s76, %s90
      %p92 = scmp.eq.s32.totalorder %s24, 0
      %p93 = por %p91, %p92
      %s94 = ssub.s32 %s18, %s25
      %p95 = scmp.eq.s32.totalorder %s94, 0
      %s97 = sadd.s32 %s96, 1
      %s98 = scalar_select %p95, %s96, %s97
      %p101 = pneg %p95
      %p102 = scmp.eq.s32.totalorder %s18, 1
      %p103 = por %p101, %p102
      %p104 = scmp.ne.s32.totalorder %s96, %s99
      %p105 = scmp.eq.s32.totalorder %s18, 0
      %p106 = por %p104, %p105
      %p107 = scmp.ne.s32.totalorder %s96, %s99
      %p108 = scmp.eq.s32.totalorder %s23, 1
      %p109 = por %p107, %p108
      %p110 = scmp.ne.s32.totalorder %s99, %s100
      %p111 = scmp.eq.s32.totalorder %s23, 0
      %p112 = por %p110, %p111
      %p113 = scmp.ne.s32.totalorder %s99, %s100
      %p114 = scmp.eq.s32.totalorder %s24, 1
      %p115 = por %p113, %p114
      %p117 = scmp.ne.s32.totalorder %s100, %s116
      %p118 = scmp.eq.s32.totalorder %s24, 0
      %p119 = por %p117, %p118
      %p120 = scmp.le.s32.totalorder 1, %s18
      %p121 = scmp.lt.s32.totalorder %s18, 3
      %p122 = pnand %p120, %p121
      %p123 = pneg %p122
      // Predicated region
      $region9: #{tpu_custom_call.1} parent=5 // pred_check
        _
      $region10: #{tpu_custom_call.1} parent=5 // pred_check_branch
        %125 = sbr.rel (%p122) target = $region12
      $region11: #{tpu_custom_call.1} parent=5 // pred_region
        %s126 = ssub.s32 %s18, 1
        // Predicated region
        $region13: #{tpu_custom_call.1} parent=11 // pred_check
          %p127 = pneg %p65
        $region14: #{tpu_custom_call.1} parent=11 // pred_check_branch
          %129 = sbr.rel (%p127) target = $region16
        $region15: #{tpu_custom_call.1} parent=11 // pred_region
          %s131 = ssub.s32 96, 96
          %132 = vsyncadd [#allocation7], %s131
          %s134 = sshll.u32 [#allocation6], 4
          %s135 = int_to_ptr.vmem [resolvable:$true] %s134
          %137 = dma.hbm_to_vmem [thread:$0]  %s1, 96, %s135, [#allocation7]
        $region16: #{tpu_custom_call.1} parent=11 // pred_fallthru
          _
        // Predicated region
        $region17: #{tpu_custom_call.1} parent=11 // pred_check
          %p138 = pneg %p86
        $region18: #{tpu_custom_call.1} parent=11 // pred_check_branch
          %140 = sbr.rel (%p138) target = $region20
        $region19: #{tpu_custom_call.1} parent=11 // pred_region
          _
        $region20: #{tpu_custom_call.1} parent=11 // pred_fallthru
          _
      $region12: #{tpu_custom_call.1} parent=5 // pred_fallthru
        _
      %p141 = scmp.lt.s32.totalorder %s18, 2
      // Predicated region
      $region21: #{tpu_custom_call.1} parent=5 // pred_check
        %p142 = pneg %p141
      $region22: #{tpu_custom_call.1} parent=5 // pred_check_branch
        %144 = sbr.rel (%p142) target = $region24
      $region23: #{tpu_custom_call.1} parent=5 // pred_region
        // Predicated region
        $region25: #{tpu_custom_call.1} parent=23 // pred_check
          %p145 = pneg %p38
        $region26: #{tpu_custom_call.1} parent=23 // pred_check_branch
          %147 = sbr.rel (%p145) target = $region28
        $region27: #{tpu_custom_call.1} parent=23 // pred_region
          %s148 = sand.u32 %s28, 1
          %s149 = scalar_lea.sflag [#allocation4], %s148
          %s150 = sand.u32 %s28, 1
          %s151 = smul.addr %s150, 1536
          %s152 = scalar_lea.vmem [#allocation3], %s151
          %s153 = smul.u32 32, %s18
          %s154 = ssub.s32 48, %s153
          %p155 = scmp.lt.s32.totalorder %s154, 32
          %s156 = scalar_select %p155, %s154, 32
          %s157 = smul.u32 128, %s156
          %s158 = smul.u32 %s157, 6
          %s160 = ssub.s32 24576, %s158
          %161 = vsyncadd %s149, %s160
          %p162 = scmp.ne.s32.totalorder 0, %s158
          %s163 = smul.addr %s153, 6
          %s164 = smul.addr %s163, 128
          %s165 = scalar_lea.hbm %s0, %s164
          %s166 = smul.u32 48, %s156
          %s167 = sshll.u32 %s152, 4
          %s168 = int_to_ptr.vmem [resolvable:$true] %s167
          %s169 = sshll.u32 %s166, 4
          %173 = dma.hbm_to_vmem [thread:$0]  (%p162), %s165, %s169, %s168, %s149, 768, 768, 48
        $region28: #{tpu_custom_call.1} parent=23 // pred_fallthru
          _
      $region24: #{tpu_custom_call.1} parent=5 // pred_fallthru
        _
      %p174 = scmp.le.s32.totalorder 1, %s18
      %p175 = scmp.lt.s32.totalorder %s18, 3
      %p176 = pnand %p174, %p175
      %p177 = pneg %p176
      // Predicated region
      $region29: #{tpu_custom_call.1} parent=5 // pred_check
        _
      $region30: #{tpu_custom_call.1} parent=5 // pred_check_branch
        %179 = sbr.rel (%p176) target = $region32
      $region31: #{tpu_custom_call.1} parent=5 // pred_region
        %s180 = ssub.s32 %s18, 1
        %s181 = sand.u32 %s31, 1
        %s182 = scalar_lea.sflag [#allocation4], %s181
        %s183 = sand.u32 %s31, 1
        %s184 = smul.addr %s183, 1536
        %s185 = scalar_lea.vmem [#allocation3], %s184
        // Predicated region
        $region33: #{tpu_custom_call.1} parent=31 // pred_check
          %p186 = pneg %p44
        $region34: #{tpu_custom_call.1} parent=31 // pred_check_branch
          %188 = sbr.rel (%p186) target = $region36
        $region35: #{tpu_custom_call.1} parent=31 // pred_region
          %189 = dma.done %s182, 24576
        $region36: #{tpu_custom_call.1} parent=31 // pred_fallthru
          _
        // Predicated region
        $region37: #{tpu_custom_call.1} parent=31 // pred_check
          %p190 = pneg %p65
        $region38: #{tpu_custom_call.1} parent=31 // pred_check_branch
          %192 = sbr.rel (%p190) target = $region40
        $region39: #{tpu_custom_call.1} parent=31 // pred_region
          %193 = dma.done [#allocation7], 96
        $region40: #{tpu_custom_call.1} parent=31 // pred_fallthru
          _
        %s194 = sand.u32 %s31, 1
        %s195 = scalar_lea.sflag [#allocation4], %s194
        %s196 = sand.u32 %s31, 1
        %s197 = smul.addr %s196, 1536
        %s198 = scalar_lea.vmem [#allocation3], %s197
        %p199 = pneg %p44
        %p200 = pneg %p41
        %p201 = pneg %p65
        %p202 = pneg %p62
        %p203 = pneg %p86
        %p204 = pneg %p83
        %p205 = pneg %p112
        %p206 = pneg %p109
        %s207 = sand.u32 %s99, 1
        %s208 = scalar_lea.sflag [#allocation5], %s207
        %s209 = sand.u32 %s99, 1
        %s210 = smul.addr %s209, 2
        %s211 = scalar_lea.vmem [#allocation8], %s210
        %s212 = smul.u32 32, %s23
        %s213 = ssub.s32 48, %s212
        %p214 = scmp.lt.s32.totalorder %s213, 32
        %s215 = scalar_select %p214, %s213, 32
        %s216 = smul.u32 128, %s215
        %s217 = smul.u32 %s216, 6
        %s218 = smul.u32 2, %s23
        %s219 = ssub.s32 3, %s218
        %p220 = scmp.lt.s32.totalorder %s219, 2
        %s221 = scalar_select %p220, %s219, 2
        %s222 = smul.u32 16, %s221
        %v223 = vld [vmem:[#allocation6] sm:$0x3f]
        %v224 = vld [vmem:[%s185] sm:$0xff]
        %v225 = vld [vmem:[%s185 + $0x8] sm:$0xff]
        %v226 = vld [vmem:[%s185 + $0x10] sm:$0xff]
        %v227 = vld [vmem:[%s185 + $0x18] sm:$0xff]
        %v228 = vld [vmem:[%s185 + $0x20] sm:$0xff]
        %v229 = vld [vmem:[%s185 + $0x28] sm:$0xff]
        %v230 = vld [vmem:[%s185 + $0x30] sm:$0xff]
        %v231 = vld [vmem:[%s185 + $0x38] sm:$0xff]
        %v232 = vld [vmem:[%s185 + $0x40] sm:$0xff]
        %v233 = vld [vmem:[%s185 + $0x48] sm:$0xff]
        %v234 = vld [vmem:[%s185 + $0x50] sm:$0xff]
        %v235 = vld [vmem:[%s185 + $0x58] sm:$0xff]
        %v236 = vld [vmem:[%s185 + $0x60] sm:$0xff]
        %v237 = vld [vmem:[%s185 + $0x68] sm:$0xff]
        %v238 = vld [vmem:[%s185 + $0x70] sm:$0xff]
        %v239 = vld [vmem:[%s185 + $0x78] sm:$0xff]
        %v240 = vld [vmem:[%s185 + $0x80] sm:$0xff]
        %v241 = vld [vmem:[%s185 + $0x88] sm:$0xff]
        %v242 = vld [vmem:[%s185 + $0x90] sm:$0xff]
        %v243 = vld [vmem:[%s185 + $0x98] sm:$0xff]
        %v244 = vld [vmem:[%s185 + $0xa0] sm:$0xff]
        %v245 = vld [vmem:[%s185 + $0xa8] sm:$0xff]
        %v246 = vld [vmem:[%s185 + $0xb0] sm:$0xff]
        %v247 = vld [vmem:[%s185 + $0xb8] sm:$0xff]
        %v248 = vld [vmem:[%s185 + $0xc0] sm:$0xff]
        %v249 = vld [vmem:[%s185 + $0xc8] sm:$0xff]
        %v250 = vld [vmem:[%s185 + $0xd0] sm:$0xff]
        %v251 = vld [vmem:[%s185 + $0xd8] sm:$0xff]
        %v252 = vld [vmem:[%s185 + $0xe0] sm:$0xff]
        %v253 = vld [vmem:[%s185 + $0xe8] sm:$0xff]
        %v254 = vld [vmem:[%s185 + $0xf0] sm:$0xff]
        %v255 = vld [vmem:[%s185 + $0xf8] sm:$0xff]
        %v256 = vld [vmem:[%s185 + $0x100] sm:$0xff]
        %v257 = vld [vmem:[%s185 + $0x108] sm:$0xff]
        %v258 = vld [vmem:[%s185 + $0x110] sm:$0xff]
        %v259 = vld [vmem:[%s185 + $0x118] sm:$0xff]
        %v260 = vld [vmem:[%s185 + $0x120] sm:$0xff]
        %v261 = vld [vmem:[%s185 + $0x128] sm:$0xff]
        %v262 = vld [vmem:[%s185 + $0x130] sm:$0xff]
        %v263 = vld [vmem:[%s185 + $0x138] sm:$0xff]
        %v264 = vld [vmem:[%s185 + $0x140] sm:$0xff]
        %v265 = vld [vmem:[%s185 + $0x148] sm:$0xff]
        %v266 = vld [vmem:[%s185 + $0x150] sm:$0xff]
        %v267 = vld [vmem:[%s185 + $0x158] sm:$0xff]
        %v268 = vld [vmem:[%s185 + $0x160] sm:$0xff]
        %v269 = vld [vmem:[%s185 + $0x168] sm:$0xff]
        %v270 = vld [vmem:[%s185 + $0x170] sm:$0xff]
        %v271 = vld [vmem:[%s185 + $0x178] sm:$0xff]
        %v272 = vld [vmem:[%s185 + $0x180] sm:$0xff]
        %v273 = vld [vmem:[%s185 + $0x188] sm:$0xff]
        %v274 = vld [vmem:[%s185 + $0x190] sm:$0xff]
        %v275 = vld [vmem:[%s185 + $0x198] sm:$0xff]
        %v276 = vld [vmem:[%s185 + $0x1a0] sm:$0xff]
        %v277 = vld [vmem:[%s185 + $0x1a8] sm:$0xff]
        %v278 = vld [vmem:[%s185 + $0x1b0] sm:$0xff]
        %v279 = vld [vmem:[%s185 + $0x1b8] sm:$0xff]
        %v280 = vld [vmem:[%s185 + $0x1c0] sm:$0xff]
        %v281 = vld [vmem:[%s185 + $0x1c8] sm:$0xff]
        %v282 = vld [vmem:[%s185 + $0x1d0] sm:$0xff]
        %v283 = vld [vmem:[%s185 + $0x1d8] sm:$0xff]
        %v284 = vld [vmem:[%s185 + $0x1e0] sm:$0xff]
        %v285 = vld [vmem:[%s185 + $0x1e8] sm:$0xff]
        %v286 = vld [vmem:[%s185 + $0x1f0] sm:$0xff]
        %v287 = vld [vmem:[%s185 + $0x1f8] sm:$0xff]
        %v288 = vld [vmem:[%s185 + $0x200] sm:$0xff]
        %v289 = vld [vmem:[%s185 + $0x208] sm:$0xff]
        %v290 = vld [vmem:[%s185 + $0x210] sm:$0xff]
        %v291 = vld [vmem:[%s185 + $0x218] sm:$0xff]
        %v292 = vld [vmem:[%s185 + $0x220] sm:$0xff]
        %v293 = vld [vmem:[%s185 + $0x228] sm:$0xff]
        %v294 = vld [vmem:[%s185 + $0x230] sm:$0xff]
        %v295 = vld [vmem:[%s185 + $0x238] sm:$0xff]
        %v296 = vld [vmem:[%s185 + $0x240] sm:$0xff]
        %v297 = vld [vmem:[%s185 + $0x248] sm:$0xff]
        %v298 = vld [vmem:[%s185 + $0x250] sm:$0xff]
        %v299 = vld [vmem:[%s185 + $0x258] sm:$0xff]
        %v300 = vld [vmem:[%s185 + $0x260] sm:$0xff]
        %v301 = vld [vmem:[%s185 + $0x268] sm:$0xff]
        %v302 = vld [vmem:[%s185 + $0x270] sm:$0xff]
        %v303 = vld [vmem:[%s185 + $0x278] sm:$0xff]
        %v304 = vld [vmem:[%s185 + $0x280] sm:$0xff]
        %v305 = vld [vmem:[%s185 + $0x288] sm:$0xff]
        %v306 = vld [vmem:[%s185 + $0x290] sm:$0xff]
        %v307 = vld [vmem:[%s185 + $0x298] sm:$0xff]
        %v308 = vld [vmem:[%s185 + $0x2a0] sm:$0xff]
        %v309 = vld [vmem:[%s185 + $0x2a8] sm:$0xff]
        %v310 = vld [vmem:[%s185 + $0x2b0] sm:$0xff]
        %v311 = vld [vmem:[%s185 + $0x2b8] sm:$0xff]
        %v312 = vld [vmem:[%s185 + $0x2c0] sm:$0xff]
        %v313 = vld [vmem:[%s185 + $0x2c8] sm:$0xff]
        %v314 = vld [vmem:[%s185 + $0x2d0] sm:$0xff]
        %v315 = vld [vmem:[%s185 + $0x2d8] sm:$0xff]
        %v316 = vld [vmem:[%s185 + $0x2e0] sm:$0xff]
        %v317 = vld [vmem:[%s185 + $0x2e8] sm:$0xff]
        %v318 = vld [vmem:[%s185 + $0x2f0] sm:$0xff]
        %v319 = vld [vmem:[%s185 + $0x2f8] sm:$0xff]
        %v320 = vld [vmem:[%s185 + $0x300] sm:$0xff]
        %v321 = vld [vmem:[%s185 + $0x308] sm:$0xff]
        %v322 = vld [vmem:[%s185 + $0x310] sm:$0xff]
        %v323 = vld [vmem:[%s185 + $0x318] sm:$0xff]
        %v324 = vld [vmem:[%s185 + $0x320] sm:$0xff]
        %v325 = vld [vmem:[%s185 + $0x328] sm:$0xff]
        %v326 = vld [vmem:[%s185 + $0x330] sm:$0xff]
        %v327 = vld [vmem:[%s185 + $0x338] sm:$0xff]
        %v328 = vld [vmem:[%s185 + $0x340] sm:$0xff]
        %v329 = vld [vmem:[%s185 + $0x348] sm:$0xff]
        %v330 = vld [vmem:[%s185 + $0x350] sm:$0xff]
        %v331 = vld [vmem:[%s185 + $0x358] sm:$0xff]
        %v332 = vld [vmem:[%s185 + $0x360] sm:$0xff]
        %v333 = vld [vmem:[%s185 + $0x368] sm:$0xff]
        %v334 = vld [vmem:[%s185 + $0x370] sm:$0xff]
        %v335 = vld [vmem:[%s185 + $0x378] sm:$0xff]
        %v336 = vld [vmem:[%s185 + $0x380] sm:$0xff]
        %v337 = vld [vmem:[%s185 + $0x388] sm:$0xff]
        %v338 = vld [vmem:[%s185 + $0x390] sm:$0xff]
        %v339 = vld [vmem:[%s185 + $0x398] sm:$0xff]
        %v340 = vld [vmem:[%s185 + $0x3a0] sm:$0xff]
        %v341 = vld [vmem:[%s185 + $0x3a8] sm:$0xff]
        %v342 = vld [vmem:[%s185 + $0x3b0] sm:$0xff]
        %v343 = vld [vmem:[%s185 + $0x3b8] sm:$0xff]
        %v344 = vld [vmem:[%s185 + $0x3c0] sm:$0xff]
        %v345 = vld [vmem:[%s185 + $0x3c8] sm:$0xff]
        %v346 = vld [vmem:[%s185 + $0x3d0] sm:$0xff]
        %v347 = vld [vmem:[%s185 + $0x3d8] sm:$0xff]
        %v348 = vld [vmem:[%s185 + $0x3e0] sm:$0xff]
        %v349 = vld [vmem:[%s185 + $0x3e8] sm:$0xff]
        %v350 = vld [vmem:[%s185 + $0x3f0] sm:$0xff]
        %v351 = vld [vmem:[%s185 + $0x3f8] sm:$0xff]
        %v352 = vld [vmem:[%s185 + $0x400] sm:$0xff]
        %v353 = vld [vmem:[%s185 + $0x408] sm:$0xff]
        %v354 = vld [vmem:[%s185 + $0x410] sm:$0xff]
        %v355 = vld [vmem:[%s185 + $0x418] sm:$0xff]
        %v356 = vld [vmem:[%s185 + $0x420] sm:$0xff]
        %v357 = vld [vmem:[%s185 + $0x428] sm:$0xff]
        %v358 = vld [vmem:[%s185 + $0x430] sm:$0xff]
        %v359 = vld [vmem:[%s185 + $0x438] sm:$0xff]
        %v360 = vld [vmem:[%s185 + $0x440] sm:$0xff]
        %v361 = vld [vmem:[%s185 + $0x448] sm:$0xff]
        %v362 = vld [vmem:[%s185 + $0x450] sm:$0xff]
        %v363 = vld [vmem:[%s185 + $0x458] sm:$0xff]
        %v364 = vld [vmem:[%s185 + $0x460] sm:$0xff]
        %v365 = vld [vmem:[%s185 + $0x468] sm:$0xff]
        %v366 = vld [vmem:[%s185 + $0x470] sm:$0xff]
        %v367 = vld [vmem:[%s185 + $0x478] sm:$0xff]
        %v368 = vld [vmem:[%s185 + $0x480] sm:$0xff]
        %v369 = vld [vmem:[%s185 + $0x488] sm:$0xff]
        %v370 = vld [vmem:[%s185 + $0x490] sm:$0xff]
        %v371 = vld [vmem:[%s185 + $0x498] sm:$0xff]
        %v372 = vld [vmem:[%s185 + $0x4a0] sm:$0xff]
        %v373 = vld [vmem:[%s185 + $0x4a8] sm:$0xff]
        %v374 = vld [vmem:[%s185 + $0x4b0] sm:$0xff]
        %v375 = vld [vmem:[%s185 + $0x4b8] sm:$0xff]
        %v376 = vld [vmem:[%s185 + $0x4c0] sm:$0xff]
        %v377 = vld [vmem:[%s185 + $0x4c8] sm:$0xff]
        %v378 = vld [vmem:[%s185 + $0x4d0] sm:$0xff]
        %v379 = vld [vmem:[%s185 + $0x4d8] sm:$0xff]
        %v380 = vld [vmem:[%s185 + $0x4e0] sm:$0xff]
        %v381 = vld [vmem:[%s185 + $0x4e8] sm:$0xff]
        %v382 = vld [vmem:[%s185 + $0x4f0] sm:$0xff]
        %v383 = vld [vmem:[%s185 + $0x4f8] sm:$0xff]
        %v384 = vld [vmem:[%s185 + $0x500] sm:$0xff]
        %v385 = vld [vmem:[%s185 + $0x508] sm:$0xff]
        %v386 = vld [vmem:[%s185 + $0x510] sm:$0xff]
        %v387 = vld [vmem:[%s185 + $0x518] sm:$0xff]
        %v388 = vld [vmem:[%s185 + $0x520] sm:$0xff]
        %v389 = vld [vmem:[%s185 + $0x528] sm:$0xff]
        %v390 = vld [vmem:[%s185 + $0x530] sm:$0xff]
        %v391 = vld [vmem:[%s185 + $0x538] sm:$0xff]
        %v392 = vld [vmem:[%s185 + $0x540] sm:$0xff]
        %v393 = vld [vmem:[%s185 + $0x548] sm:$0xff]
        %v394 = vld [vmem:[%s185 + $0x550] sm:$0xff]
        %v395 = vld [vmem:[%s185 + $0x558] sm:$0xff]
        %v396 = vld [vmem:[%s185 + $0x560] sm:$0xff]
        %v397 = vld [vmem:[%s185 + $0x568] sm:$0xff]
        %v398 = vld [vmem:[%s185 + $0x570] sm:$0xff]
        %v399 = vld [vmem:[%s185 + $0x578] sm:$0xff]
        %v400 = vld [vmem:[%s185 + $0x580] sm:$0xff]
        %v401 = vld [vmem:[%s185 + $0x588] sm:$0xff]
        %v402 = vld [vmem:[%s185 + $0x590] sm:$0xff]
        %v403 = vld [vmem:[%s185 + $0x598] sm:$0xff]
        %v404 = vld [vmem:[%s185 + $0x5a0] sm:$0xff]
        %v405 = vld [vmem:[%s185 + $0x5a8] sm:$0xff]
        %v406 = vld [vmem:[%s185 + $0x5b0] sm:$0xff]
        %v407 = vld [vmem:[%s185 + $0x5b8] sm:$0xff]
        %v408 = vld [vmem:[%s185 + $0x5c0] sm:$0xff]
        %v409 = vld [vmem:[%s185 + $0x5c8] sm:$0xff]
        %v410 = vld [vmem:[%s185 + $0x5d0] sm:$0xff]
        %v411 = vld [vmem:[%s185 + $0x5d8] sm:$0xff]
        %v412 = vld [vmem:[%s185 + $0x5e0] sm:$0xff]
        %v413 = vld [vmem:[%s185 + $0x5e8] sm:$0xff]
        %v414 = vld [vmem:[%s185 + $0x5f0] sm:$0xff]
        %v415 = vld [vmem:[%s185 + $0x5f8] sm:$0xff]
        %v416 = vld [vmem:[#allocation2] sm:$0x1]
        %418 = vset.pattern.permute.xlu0 0
        %419 = vperm.xlu0 %418, %v416
        %v420 = vpop.permute.xlu0 %419
        %v422 = vlaneseq
        %v423 = vshrl.u32 %v422, 7
        %v424 = vsub.s32 0, %v423
        %v425 = vrot.slane %v420, %v424
        %v427 = vlaneseq
        %v428 = vshrl.u32 %v427, 7
        %v429 = vsub.s32 0, %v428
        %v430 = vrot.slane %v223, %v429
        %v431 = vlaneseq
        %v432 = vshrl.u32 %v431, 7
        %v433 = vsub.s32 1, %v432
        %v434 = vrot.slane %v223, %v433
        %v435 = vlaneseq
        %v436 = vshrl.u32 %v435, 7
        %v437 = vsub.s32 2, %v436
        %v438 = vrot.slane %v223, %v437
        %v439 = vlaneseq
        %v440 = vshrl.u32 %v439, 7
        %v441 = vsub.s32 3, %v440
        %v442 = vrot.slane %v223, %v441
        %v443 = vlaneseq
        %v444 = vshrl.u32 %v443, 7
        %v445 = vsub.s32 4, %v444
        %v446 = vrot.slane %v223, %v445
        %v447 = vlaneseq
        %v448 = vshrl.u32 %v447, 7
        %v449 = vsub.s32 5, %v448
        %v450 = vrot.slane %v223, %v449
        %457 = vmatprep.subr.mxu0 %v225
        %458 = vmatpush1.xpose.msra.mxu0 %v224
        %459 = vmatprep.subr.mxu0 %v231
        %460 = vmatpush1.xpose.msra.mxu0 %v230
        %461 = vmatprep.subr.mxu0 %v237
        %462 = vmatpush1.xpose.msra.mxu0 %v236
        %463 = vmatprep.subr.mxu0 %v243
        %464 = vmatpush1.xpose.msra.mxu0 %v242
        %465 = vmatprep.subr.mxu0 %v249
        %466 = vmatpush1.xpose.msra.mxu0 %v248
        %467 = vmatprep.subr.mxu0 %v255
        %468 = vmatpush1.xpose.msra.mxu0 %v254
        %469 = vmatprep.subr.mxu0 %v261
        %470 = vmatpush1.xpose.msra.mxu0 %v260
        %471 = vmatprep.subr.mxu0 %v267
        %472 = vmatpush1.xpose.msra.mxu0 %v266
        %473 = vmatprep.subr.mxu0 %v273
        %474 = vmatpush1.xpose.msra.mxu0 %v272
        %475 = vmatprep.subr.mxu0 %v279
        %476 = vmatpush1.xpose.msra.mxu0 %v278
        %477 = vmatprep.subr.mxu0 %v285
        %478 = vmatpush1.xpose.msra.mxu0 %v284
        %479 = vmatprep.subr.mxu0 %v291
        %480 = vmatpush1.xpose.msra.mxu0 %v290
        %481 = vmatprep.subr.mxu0 %v297
        %482 = vmatpush1.xpose.msra.mxu0 %v296
        %483 = vmatprep.subr.mxu0 %v303
        %484 = vmatpush1.xpose.msra.mxu0 %v302
        %485 = vmatprep.subr.mxu0 %v309
        %486 = vmatpush1.xpose.msra.mxu0 %v308
        %487 = vmatprep.subr.mxu0 %v315
        %488 = vmatpush1.xpose.msra.mxu0 %v314
        %489 = vmatprep.subr.mxu0 %v321
        %490 = vmatpush1.xpose.msra.mxu0 %v320
        %491 = vmatprep.subr.mxu0 %v327
        %492 = vmatpush1.xpose.msra.mxu0 %v326
        %493 = vmatprep.subr.mxu0 %v333
        %494 = vmatpush1.xpose.msra.mxu0 %v332
        %495 = vmatprep.subr.mxu0 %v339
        %496 = vmatpush1.xpose.msra.mxu0 %v338
        %497 = vmatprep.subr.mxu0 %v345
        %498 = vmatpush1.xpose.msra.mxu0 %v344
        %499 = vmatprep.subr.mxu0 %v351
        %500 = vmatpush1.xpose.msra.mxu0 %v350
        %501 = vmatprep.subr.mxu0 %v357
        %502 = vmatpush1.xpose.msra.mxu0 %v356
        %503 = vmatprep.subr.mxu0 %v363
        %504 = vmatpush1.xpose.msra.mxu0 %v362
        %505 = vmatprep.subr.mxu0 %v369
        %506 = vmatpush1.xpose.msra.mxu0 %v368
        %507 = vmatprep.subr.mxu0 %v375
        %508 = vmatpush1.xpose.msra.mxu0 %v374
        %509 = vmatprep.subr.mxu0 %v381
        %510 = vmatpush1.xpose.msra.mxu0 %v380
        %511 = vmatprep.subr.mxu0 %v387
        %512 = vmatpush1.xpose.msra.mxu0 %v386
        %513 = vmatprep.subr.mxu0 %v393
        %514 = vmatpush1.xpose.msra.mxu0 %v392
        %515 = vmatprep.subr.mxu0 %v399
        %516 = vmatpush1.xpose.msra.mxu0 %v398
        %517 = vmatprep.subr.mxu0 %v405
        %518 = vmatpush1.xpose.msra.mxu0 %v404
        %519 = vmatprep.subr.mxu0 %v411
        %520 = vmatpush1.xpose.msra.mxu0 %v410
        %521 = vmatprep.mubr.f32.mxu0 %v434
        %522 = vmatmul.mubr.f32.gmra.mrb[0].mxu0 %v430
        %v523 = vpop.f32.mrb[0].mxu0
        %v524 = vadd.f32 %v425, %v523
        %v525 = vpop.f32.mrb[0].mxu0
        %v526 = vadd.f32 %v425, %v525
        %527 = vdwg.mxu0
        %528 = vmatprep.subr.mxu0 %v227
        %529 = vmatpush1.xpose.msra.mxu0 %v226
        %530 = vmatprep.subr.mxu0 %v233
        %531 = vmatpush1.xpose.msra.mxu0 %v232
        %532 = vmatprep.subr.mxu0 %v239
        %533 = vmatpush1.xpose.msra.mxu0 %v238
        %534 = vmatprep.subr.mxu0 %v245
        %535 = vmatpush1.xpose.msra.mxu0 %v244
        %536 = vmatprep.subr.mxu0 %v251
        %537 = vmatpush1.xpose.msra.mxu0 %v250
        %538 = vmatprep.subr.mxu0 %v257
        %539 = vmatpush1.xpose.msra.mxu0 %v256
        %540 = vmatprep.subr.mxu0 %v263
        %541 = vmatpush1.xpose.msra.mxu0 %v262
        %542 = vmatprep.subr.mxu0 %v269
        %543 = vmatpush1.xpose.msra.mxu0 %v268
        %544 = vmatprep.subr.mxu0 %v275
        %545 = vmatpush1.xpose.msra.mxu0 %v274
        %546 = vmatprep.subr.mxu0 %v281
        %547 = vmatpush1.xpose.msra.mxu0 %v280
        %548 = vmatprep.subr.mxu0 %v287
        %549 = vmatpush1.xpose.msra.mxu0 %v286
        %550 = vmatprep.subr.mxu0 %v293
        %551 = vmatpush1.xpose.msra.mxu0 %v292
        %552 = vmatprep.subr.mxu0 %v299
        %553 = vmatpush1.xpose.msra.mxu0 %v298
        %554 = vmatprep.subr.mxu0 %v305
        %555 = vmatpush1.xpose.msra.mxu0 %v304
        %556 = vmatprep.subr.mxu0 %v311
        %557 = vmatpush1.xpose.msra.mxu0 %v310
        %558 = vmatprep.subr.mxu0 %v317
        %559 = vmatpush1.xpose.msra.mxu0 %v316
        %560 = vmatprep.subr.mxu0 %v323
        %561 = vmatpush1.xpose.msra.mxu0 %v322
        %562 = vmatprep.subr.mxu0 %v329
        %563 = vmatpush1.xpose.msra.mxu0 %v328
        %564 = vmatprep.subr.mxu0 %v335
        %565 = vmatpush1.xpose.msra.mxu0 %v334
        %566 = vmatprep.subr.mxu0 %v341
        %567 = vmatpush1.xpose.msra.mxu0 %v340
        %568 = vmatprep.subr.mxu0 %v347
        %569 = vmatpush1.xpose.msra.mxu0 %v346
        %570 = vmatprep.subr.mxu0 %v353
        %571 = vmatpush1.xpose.msra.mxu0 %v352
        %572 = vmatprep.subr.mxu0 %v359
        %573 = vmatpush1.xpose.msra.mxu0 %v358
        %574 = vmatprep.subr.mxu0 %v365
        %575 = vmatpush1.xpose.msra.mxu0 %v364
        %576 = vmatprep.subr.mxu0 %v371
        %577 = vmatpush1.xpose.msra.mxu0 %v370
        %578 = vmatprep.subr.mxu0 %v377
        %579 = vmatpush1.xpose.msra.mxu0 %v376
        %580 = vmatprep.subr.mxu0 %v383
        %581 = vmatpush1.xpose.msra.mxu0 %v382
        %582 = vmatprep.subr.mxu0 %v389
        %583 = vmatpush1.xpose.msra.mxu0 %v388
        %584 = vmatprep.subr.mxu0 %v395
        %585 = vmatpush1.xpose.msra.mxu0 %v394
        %586 = vmatprep.subr.mxu0 %v401
        %587 = vmatpush1.xpose.msra.mxu0 %v400
        %588 = vmatprep.subr.mxu0 %v407
        %589 = vmatpush1.xpose.msra.mxu0 %v406
        %590 = vmatprep.subr.mxu0 %v413
        %591 = vmatpush1.xpose.msra.mxu0 %v412
        %592 = vmatprep.mubr.f32.mxu0 %v442
        %593 = vmatmul.mubr.f32.gmra.mrb[0].mxu0 %v438
        %v594 = vpop.f32.mrb[0].mxu0
        %v595 = vadd.f32 %v524, %v594
        %v596 = vpop.f32.mrb[0].mxu0
        %v597 = vadd.f32 %v526, %v596
        %598 = vdwg.mxu0
        %599 = vmatprep.subr.mxu0 %v229
        %600 = vmatpush1.xpose.msra.mxu0 %v228
        %601 = vmatprep.subr.mxu0 %v235
        %602 = vmatpush1.xpose.msra.mxu0 %v234
        %603 = vmatprep.subr.mxu0 %v241
        %604 = vmatpush1.xpose.msra.mxu0 %v240
        %605 = vmatprep.subr.mxu0 %v247
        %606 = vmatpush1.xpose.msra.mxu0 %v246
        %607 = vmatprep.subr.mxu0 %v253
        %608 = vmatpush1.xpose.msra.mxu0 %v252
        %609 = vmatprep.subr.mxu0 %v259
        %610 = vmatpush1.xpose.msra.mxu0 %v258
        %611 = vmatprep.subr.mxu0 %v265
        %612 = vmatpush1.xpose.msra.mxu0 %v264
        %613 = vmatprep.subr.mxu0 %v271
        %614 = vmatpush1.xpose.msra.mxu0 %v270
        %615 = vmatprep.subr.mxu0 %v277
        %616 = vmatpush1.xpose.msra.mxu0 %v276
        %617 = vmatprep.subr.mxu0 %v283
        %618 = vmatpush1.xpose.msra.mxu0 %v282
        %619 = vmatprep.subr.mxu0 %v289
        %620 = vmatpush1.xpose.msra.mxu0 %v288
        %621 = vmatprep.subr.mxu0 %v295
        %622 = vmatpush1.xpose.msra.mxu0 %v294
        %623 = vmatprep.subr.mxu0 %v301
        %624 = vmatpush1.xpose.msra.mxu0 %v300
        %625 = vmatprep.subr.mxu0 %v307
        %626 = vmatpush1.xpose.msra.mxu0 %v306
        %627 = vmatprep.subr.mxu0 %v313
        %628 = vmatpush1.xpose.msra.mxu0 %v312
        %629 = vmatprep.subr.mxu0 %v319
        %630 = vmatpush1.xpose.msra.mxu0 %v318
        %631 = vmatprep.subr.mxu0 %v325
        %632 = vmatpush1.xpose.msra.mxu0 %v324
        %633 = vmatprep.subr.mxu0 %v331
        %634 = vmatpush1.xpose.msra.mxu0 %v330
        %635 = vmatprep.subr.mxu0 %v337
        %636 = vmatpush1.xpose.msra.mxu0 %v336
        %637 = vmatprep.subr.mxu0 %v343
        %638 = vmatpush1.xpose.msra.mxu0 %v342
        %639 = vmatprep.subr.mxu0 %v349
        %640 = vmatpush1.xpose.msra.mxu0 %v348
        %641 = vmatprep.subr.mxu0 %v355
        %642 = vmatpush1.xpose.msra.mxu0 %v354
        %643 = vmatprep.subr.mxu0 %v361
        %644 = vmatpush1.xpose.msra.mxu0 %v360
        %645 = vmatprep.subr.mxu0 %v367
        %646 = vmatpush1.xpose.msra.mxu0 %v366
        %647 = vmatprep.subr.mxu0 %v373
        %648 = vmatpush1.xpose.msra.mxu0 %v372
        %649 = vmatprep.subr.mxu0 %v379
        %650 = vmatpush1.xpose.msra.mxu0 %v378
        %651 = vmatprep.subr.mxu0 %v385
        %652 = vmatpush1.xpose.msra.mxu0 %v384
        %653 = vmatprep.subr.mxu0 %v391
        %654 = vmatpush1.xpose.msra.mxu0 %v390
        %655 = vmatprep.subr.mxu0 %v397
        %656 = vmatpush1.xpose.msra.mxu0 %v396
        %657 = vmatprep.subr.mxu0 %v403
        %658 = vmatpush1.xpose.msra.mxu0 %v402
        %659 = vmatprep.subr.mxu0 %v409
        %660 = vmatpush1.xpose.msra.mxu0 %v408
        %661 = vmatprep.subr.mxu0 %v415
        %662 = vmatpush1.xpose.msra.mxu0 %v414
        %663 = vmatprep.mubr.f32.mxu0 %v450
        %664 = vmatmul.mubr.f32.gmra.mrb[0].mxu0 %v446
        %v665 = vpop.f32.mrb[0].mxu0
        %v666 = vadd.f32 %v595, %v665
        %v667 = vpop.f32.mrb[0].mxu0
        %v668 = vadd.f32 %v597, %v667
        %669 = vdwg.mxu0
        %v672 = vcombine.low %v666, %v668
        %v674 = vunpack.c.l.s4 1966171168
        %v675 = vunpack.c.0.s8 %v674
        %v676 = vlaneseq
        %v677 = vshrl.u32 %v676, 7
        %v678 = vsub.s32 %v675, %v677
        %v679 = vrot.slane %v672, %v678
        %v681 = vunpack.c.l.s4 1966171168
        %v682 = vunpack.c.0.s8 %v681
        %v683 = vlaneseq
        %v684 = vshrl.u32 %v683, 7
        %v685 = vsub.s32 %v682, %v684
        %v686 = vrot.slane %v679, %v685
        %v688 = vlaneseq
        %vm689 = vcmp.ge.s32.totalorder %v688, 0
        %vm690 = vcmp.lt.s32.totalorder %v688, 256
        %vm691 = vmand %vm689, %vm690
        %692 = vst.msk [vmem:[%s211] sm:$0x3] %vm691, %v686
        %s693 = sand.u32 %s99, 1
        %s694 = scalar_lea.sflag [#allocation5], %s693
        %s695 = sand.u32 %s99, 1
        %s696 = smul.addr %s695, 2
        %s697 = scalar_lea.vmem [#allocation8], %s696
        // Predicated region
        $region41: #{tpu_custom_call.1} parent=31 // pred_check
          %p698 = pneg %p109
        $region42: #{tpu_custom_call.1} parent=31 // pred_check_branch
          %700 = sbr.rel (%p698) target = $region44
        $region43: #{tpu_custom_call.1} parent=31 // pred_region
          %s701 = smul.u32 2, %s23
          %s702 = ssub.s32 3, %s701
          %p703 = scmp.lt.s32.totalorder %s702, 2
          %s704 = scalar_select %p703, %s702, 2
          %s705 = smul.u32 16, %s704
          %s707 = ssub.s32 32, %s705
          %708 = vsyncadd %s694, %s707
          %p709 = scmp.ne.s32.totalorder 0, %s705
          %s710 = smul.addr %s701, 16
          %s711 = scalar_lea.hbm %s3, %s710
          %s712 = sshll.u32 %s704, 4
          %s713 = sshll.u32 %s697, 4
          %s714 = int_to_ptr.vmem [resolvable:$true] %s713
          %716 = dma.vmem_to_hbm [thread:$0]  (%p709), %s714, %s712, %s711, %s694
        $region44: #{tpu_custom_call.1} parent=31 // pred_fallthru
          _
      $region32: #{tpu_custom_call.1} parent=5 // pred_fallthru
        _
      %p717 = scmp.le.s32.totalorder 2, %s18
      // Predicated region
      $region45: #{tpu_custom_call.1} parent=5 // pred_check
        %p718 = pneg %p717
      $region46: #{tpu_custom_call.1} parent=5 // pred_check_branch
        %720 = sbr.rel (%p718) target = $region48
      $region47: #{tpu_custom_call.1} parent=5 // pred_region
        %s721 = ssub.s32 %s18, 2
        // Predicated region
        $region49: #{tpu_custom_call.1} parent=47 // pred_check
          %p722 = pneg %p115
        $region50: #{tpu_custom_call.1} parent=47 // pred_check_branch
          %724 = sbr.rel (%p722) target = $region52
        $region51: #{tpu_custom_call.1} parent=47 // pred_region
          %s725 = sand.u32 %s100, 1
          %s726 = scalar_lea.sflag [#allocation5], %s725
          %s727 = sand.u32 %s100, 1
          %s728 = smul.addr %s727, 2
          %s729 = scalar_lea.vmem [#allocation8], %s728
          %730 = dma.done %s726, 32
        $region52: #{tpu_custom_call.1} parent=47 // pred_fallthru
          _
      $region48: #{tpu_custom_call.1} parent=5 // pred_fallthru
        _
    $region6: #{tpu_custom_call.1} parent=1 // loop_footer
      %s22 = sadd.s32 1, %s18
    $region7: #{tpu_custom_call.1} parent=1 // loop_footer_branch
      %17 = sbr.rel target = $region3
    $region8: #{tpu_custom_call.1} parent=1 // loop_exit
      _
    %731 = vsyncpa [#allocation4], 1
    %s732 = scalar_lea.sflag [#allocation4], 1
    %733 = vsyncpa %s732, 1
    %734 = vsyncpa [#allocation7], 1
    %735 = vsyncpa [#allocation5], 1
    %s736 = scalar_lea.sflag [#allocation5], 1
    %737 = vsyncpa %s736, 1

</llo_original>
